<compile_context>
chip_gen: v5e
topology: v5e:2x2
jax: 0.10.0
libtpu: 0.0.40
codegen_flags: <defaults>
</compile_context>

<pallas_src>
import jax
import jax.numpy as jnp
from jax.experimental import pallas as pl
from jax.experimental.pallas import tpu as pltpu

_LANE = 128
_BLOCK_GROUPS = 128   # sublane-groups per grid step -> 512 KiB per block (any dtype)
_NCORES = 2           # leading parallel axis for the reduction (megacore on v7x)


def _sublanes_for(dtype):
    """Native sublane packing: f32 -> 8, bf16 -> 16, int8/fp8 -> 32."""
    itemsize = jnp.dtype(dtype).itemsize
    return 8 * max(1, 4 // itemsize)


# ---------------------------------------------------------------------------
# Pallas kernels
# ---------------------------------------------------------------------------
def _sumsq_kernel(x_ref, o_ref):
    """Accumulate per-(sublane,lane) partial sums of squares with VPU adds only.

    x_ref: (_BLOCK_GROUPS, sub, 128) in the gradients' native dtype.
    o_ref: (1, sub, 128) float32 partial sums, resident across the inner axis.
    """
    @pl.when(pl.program_id(1) == 0)
    def _():
        o_ref[...] = jnp.zeros_like(o_ref)

    x = x_ref[...].astype(jnp.float32)
    # Reduction over the leading (group) axis = elementwise vreg adds (VPU);
    # the cross-sublane/lane reduce is deferred to the wrapper.
    o_ref[...] += jnp.sum(x * x, axis=0, keepdims=True)


def _scale_kernel(scale_ref, g_ref, o_ref):
    """Elementwise g * (1/mean); scale is a (1,) f32 scalar living in SMEM."""
    o_ref[...] = (g_ref[...].astype(jnp.float32) * scale_ref[0]).astype(o_ref.dtype)


# ---------------------------------------------------------------------------
# pallas_call wrappers (traced inside the jitted step below)
# ---------------------------------------------------------------------------
def _grad_sumsq(tiles):
    """tiles: (n_groups, sub, 128). Returns scalar f32 sum of squares."""
    n_groups, sub, lane = tiles.shape
    steps_per_core = n_groups // (_NCORES * _BLOCK_GROUPS)
    partial = pl.pallas_call(
        _sumsq_kernel,
        out_shape=jax.ShapeDtypeStruct((_NCORES, sub, lane), jnp.float32),
        grid_spec=pltpu.PrefetchScalarGridSpec(
            num_scalar_prefetch=0,
            grid=(_NCORES, steps_per_core),
            in_specs=[pl.BlockSpec(
                (_BLOCK_GROUPS, sub, lane),
                lambda c, i: (c * steps_per_core + i, 0, 0))],
            out_specs=pl.BlockSpec((1, sub, lane), lambda c, i: (c, 0, 0)),
        ),
        compiler_params=pltpu.CompilerParams(
            dimension_semantics=("parallel", "arbitrary")),
    )(tiles)
    # Tiny (NCORES * sub * 128)-element final reduce — negligible, done in XLA.
    return jnp.sum(partial)


def _scale_tiles(tiles, inv_scale):
    """tiles: (n_groups, sub, 128); inv_scale: (1,) f32 in SMEM."""
    n_groups, sub, lane = tiles.shape
    return pl.pallas_call(
        _scale_kernel,
        out_shape=jax.ShapeDtypeStruct(tiles.shape, tiles.dtype),
        grid_spec=pltpu.PrefetchScalarGridSpec(
            num_scalar_prefetch=0,
            grid=(n_groups // _BLOCK_GROUPS,),
            in_specs=[
                pl.BlockSpec(memory_space=pltpu.MemorySpace.SMEM),
                pl.BlockSpec((_BLOCK_GROUPS, sub, lane), lambda i: (i, 0, 0)),
            ],
            out_specs=pl.BlockSpec((_BLOCK_GROUPS, sub, lane), lambda i: (i, 0, 0)),
        ),
        compiler_params=pltpu.CompilerParams(
            dimension_semantics=("parallel",)),
    )(inv_scale, tiles)


# ---------------------------------------------------------------------------
# Packing + fused normalization step (fully on-device, no host syncs)
# ---------------------------------------------------------------------------
def _pack(grads, dtype):
    """Flatten + concatenate all grads and zero-pad to (n_groups, sub, 128)."""
    sub = _sublanes_for(dtype)
    flats = [jnp.ravel(g).astype(dtype) for g in grads]
    flat = flats[0] if len(flats) == 1 else jnp.concatenate(flats)
    chunk = _NCORES * _BLOCK_GROUPS * sub * _LANE
    n_pad = pl.cdiv(flat.size, chunk) * chunk
    flat = jnp.pad(flat, (0, n_pad - flat.size))
    return flat.reshape(n_pad // (sub * _LANE), sub, _LANE)


@jax.jit
def _normalize_step(grads, moving_norm, momentum, clip):
    # Common tile dtype: native if all grads agree, otherwise f32.
    common = grads[0].dtype
    for g in grads:
        if g.dtype != common:
            common = jnp.dtype(jnp.float32)
            break

    tiles = _pack(grads, common)                     # built once, reused twice
    norm = jnp.sqrt(_grad_sumsq(tiles))              # pass 1: reduction
    new_moving = moving_norm * momentum + (1.0 - momentum) * norm
    mean = jnp.maximum(new_moving, clip)
    inv = (1.0 / mean).astype(jnp.float32).reshape(1)
    scaled_flat = _scale_tiles(tiles, inv).reshape(-1)   # pass 2: scaling

    new_grads = []
    off = 0
    for g in grads:
        new_grads.append(
            scaled_flat[off:off + g.size].reshape(g.shape).astype(g.dtype))
        off += g.size
    return norm / mean, new_moving, tuple(new_grads)


class GradientNormalizer:
    """JAX/Pallas port. `is_first` is host-tracked control state; `moving_norm`
    stays on device so no device->host sync happens inside a call. Gradients are
    returned scaled (functional) instead of mutated in place."""

    def __init__(self, clip=0.01, momentum=0.9):
        self._momentum = float(momentum)
        self._clip = float(clip)
        self.is_first = True                             # register_buffer('is_first', ...)
        self.moving_norm = jnp.zeros((), jnp.float32)    # register_buffer('moving_norm', ...)

    def __call__(self, grads):
        grads = tuple(grads)
        momentum = 0.0 if self.is_first else self._momentum
        ratio, self.moving_norm, new_grads = _normalize_step(
            grads, self.moving_norm, momentum, self._clip)
        self.is_first = False
        return ratio, list(new_grads)


# ---------------------------------------------------------------------------
# Demo / self-check
# ---------------------------------------------------------------------------
if __name__ == "__main__":
    key = jax.random.PRNGKey(0)
    k1, k2, k3 = jax.random.split(key, 3)
    # Synthetic gradients for a tiny NCHW conv model (deterministic from PRNGKey(0)).
    grads = [
        jax.random.normal(k1, (4, 4, 3, 3), jnp.float32),   # conv weight grad (OIHW)
        jax.random.normal(k2, (32, 16), jnp.float32),        # linear weight grad
        jax.random.normal(k3, (32,), jnp.float32),            # bias grad
    ]

    gn = GradientNormalizer(clip=0.01, momentum=0.9)
    ratio, new_grads = gn(grads)
    jax.block_until_ready(ratio)
    for g in new_grads:
        jax.block_until_ready(g)

    # Reference check in plain JAX.
    ref_norm = float(jnp.sqrt(sum(jnp.sum(g.astype(jnp.float32) ** 2) for g in grads)))
    ref_mean = max(ref_norm, 0.01)  # first call: momentum == 0
    assert abs(float(ratio) - ref_norm / ref_mean) < 1e-4, (float(ratio), ref_norm / ref_mean)
    for g, ng in zip(grads, new_grads):
        assert jnp.allclose(ng, g / ref_mean, atol=1e-5)

    # Second call exercises the momentum branch (no retrace: momentum is traced).
    ratio2, _ = gn(grads)
    jax.block_until_ready(ratio2)
    ref_moving2 = 0.9 * ref_norm + 0.1 * ref_norm
    assert abs(float(ratio2) - ref_norm / max(ref_moving2, 0.01)) < 1e-4

    print("KERNEL_OK")
</pallas_src>

<mosaic_0001>
module attributes {stable_mosaic.version = 11 : i64} {
  func.func @_scale_kernel(%arg0: i32, %arg1: memref<1xf32, #tpu.memory_space<smem>>, %arg2: memref<128x8x128xf32, #tpu.memory_space<vmem>>, %arg3: memref<128x8x128xf32, #tpu.memory_space<vmem>>) attributes {dimension_semantics = [#tpu.dimension_semantics<parallel>], iteration_bounds = array<i64: 2>, scalar_prefetch = 0 : i64, scratch_operands = 0 : i64, tpu.core_type = #tpu.core_type<tc>, window_params = [{transform_indices = @transform_0, window_bounds = array<i64: 1>}, {transform_indices = @transform_1, window_bounds = array<i64: 128, 8, 128>}, {transform_indices = @transform_2, window_bounds = array<i64: 128, 8, 128>}]} {
    %c0 = arith.constant 0 : index
    %c0_0 = arith.constant 0 : index
    %c0_1 = arith.constant 0 : index
    %0 = vector.load %arg2[%c0, %c0_0, %c0_1] : memref<128x8x128xf32, #tpu.memory_space<vmem>>, vector<128x8x128xf32>
    %c0_2 = arith.constant 0 : index
    %1 = memref.load %arg1[%c0_2] : memref<1xf32, #tpu.memory_space<smem>>
    %2 = vector.broadcast %1 : f32 to vector<128x8x128xf32>
    %3 = arith.mulf %0, %2 : vector<128x8x128xf32>
    %c0_3 = arith.constant 0 : index
    %c0_4 = arith.constant 0 : index
    %c0_5 = arith.constant 0 : index
    %4 = vector.load %arg3[%c0_3, %c0_4, %c0_5] : memref<128x8x128xf32, #tpu.memory_space<vmem>>, vector<128x8x128xf32>
    tpu.vector_store %arg3[%c0_3, %c0_4, %c0_5], %3 {strides = array<i32>} : memref<128x8x128xf32, #tpu.memory_space<vmem>>, vector<128x8x128xf32>,
    return
  }
  func.func @transform_0(%arg0: i32) -> i32 {
    %c0_i32 = arith.constant 0 : i32
    %c0_i32_0 = arith.constant 0 : i32
    return %c0_i32 : i32
  }
  func.func @transform_1(%arg0: i32) -> (i32, i32, i32) {
    %c0_i32 = arith.constant 0 : i32
    %c0_i32_0 = arith.constant 0 : i32
    %c0_i32_1 = arith.constant 0 : i32
    return %arg0, %c0_i32, %c0_i32_0 : i32, i32, i32
  }
  func.func @transform_2(%arg0: i32) -> (i32, i32, i32) {
    %c0_i32 = arith.constant 0 : i32
    %c0_i32_0 = arith.constant 0 : i32
    %c0_i32_1 = arith.constant 0 : i32
    return %arg0, %c0_i32, %c0_i32_0 : i32, i32, i32
  }
}

module attributes {stable_mosaic.version = 11 : i64} {
  func.func @_sumsq_kernel(%arg0: i32, %arg1: i32, %arg2: memref<128x8x128xf32, #tpu.memory_space<vmem>>, %arg3: memref<1x8x128xf32, #tpu.memory_space<vmem>>) attributes {dimension_semantics = [#tpu.dimension_semantics<parallel>, #tpu.dimension_semantics<arbitrary>], iteration_bounds = array<i64: 2, 1>, scalar_prefetch = 0 : i64, scratch_operands = 0 : i64, tpu.core_type = #tpu.core_type<tc>, window_params = [{transform_indices = @transform_0, window_bounds = array<i64: 128, 8, 128>}, {transform_indices = @transform_1, window_bounds = array<i64: 1, 8, 128>}]} {
    %c0_i32 = arith.constant 0 : i32
    %0 = arith.cmpi eq, %arg1, %c0_i32 : i32
    %1 = arith.extui %0 : i1 to i32
    %c0_i32_0 = arith.constant 0 : i32
    %2 = arith.cmpi ne, %1, %c0_i32_0 : i32
    scf.if %2 {
      %cst_9 = arith.constant 0.000000e+00 : f32
      %10 = vector.broadcast %cst_9 : f32 to vector<1x8x128xf32>
      %c0_10 = arith.constant 0 : index
      %c0_11 = arith.constant 0 : index
      %c0_12 = arith.constant 0 : index
      %11 = vector.load %arg3[%c0_10, %c0_11, %c0_12] : memref<1x8x128xf32, #tpu.memory_space<vmem>>, vector<1x8x128xf32>
      tpu.vector_store %arg3[%c0_10, %c0_11, %c0_12], %10 {strides = array<i32>} : memref<1x8x128xf32, #tpu.memory_space<vmem>>, vector<1x8x128xf32>,
    } else {
    }
    %c0 = arith.constant 0 : index
    %c0_1 = arith.constant 0 : index
    %c0_2 = arith.constant 0 : index
    %3 = vector.load %arg2[%c0, %c0_1, %c0_2] : memref<128x8x128xf32, #tpu.memory_space<vmem>>, vector<128x8x128xf32>
    %c0_3 = arith.constant 0 : index
    %c0_4 = arith.constant 0 : index
    %c0_5 = arith.constant 0 : index
    %4 = vector.load %arg3[%c0_3, %c0_4, %c0_5] : memref<1x8x128xf32, #tpu.memory_space<vmem>>, vector<1x8x128xf32>
    %5 = arith.mulf %3, %3 : vector<128x8x128xf32>
    %cst = arith.constant dense<0.000000e+00> : vector<8x128xf32>
    %6 = vector.multi_reduction <add>, %5, %cst [0] : vector<128x8x128xf32> to vector<8x128xf32>
    %7 = vector.shape_cast %6 : vector<8x128xf32> to vector<1x8x128xf32>
    %8 = arith.addf %4, %7 : vector<1x8x128xf32>
    %c0_6 = arith.constant 0 : index
    %c0_7 = arith.constant 0 : index
    %c0_8 = arith.constant 0 : index
    %9 = vector.load %arg3[%c0_6, %c0_7, %c0_8] : memref<1x8x128xf32, #tpu.memory_space<vmem>>, vector<1x8x128xf32>
    tpu.vector_store %arg3[%c0_6, %c0_7, %c0_8], %8 {strides = array<i32>} : memref<1x8x128xf32, #tpu.memory_space<vmem>>, vector<1x8x128xf32>,
    return
  }
  func.func @transform_0(%arg0: i32, %arg1: i32) -> (i32, i32, i32) {
    %c1_i32 = arith.constant 1 : i32
    %0 = arith.muli %arg0, %c1_i32 : i32
    %1 = arith.addi %0, %arg1 : i32
    %c0_i32 = arith.constant 0 : i32
    %c0_i32_0 = arith.constant 0 : i32
    %c0_i32_1 = arith.constant 0 : i32
    return %1, %c0_i32, %c0_i32_0 : i32, i32, i32
  }
  func.func @transform_1(%arg0: i32, %arg1: i32) -> (i32, i32, i32) {
    %c0_i32 = arith.constant 0 : i32
    %c0_i32_0 = arith.constant 0 : i32
    %c0_i32_1 = arith.constant 0 : i32
    return %arg0, %c0_i32, %c0_i32_0 : i32, i32, i32
  }
}

</mosaic_0001>

<llo_original>
// kernel: _normalize_step.2
$region0: #{_normalize_step.2}
  #allocation0 [shape = 'u32[]', space=smem, size = 0x4, offset = 0x4, fixed_abs, tag = 'smem constant byte address 0x4 - core index']
  #allocation1 [shape = 'u32[72,128]{1,0:T(1,128)}', space=vmem, size = 0x9000, scoped, tag = 'internal scratch']
  %s0 = inlined_call_operand.vmem [shape: f32[256,8,128], index: 0, kind: input, shape index: {}]
  %s1 = inlined_call_operand.vmem [shape: f32[2,8,128], index: 1, kind: output, shape index: {}]
  %s2 = sld [smem:[#allocation0]]
  $region41: #{_normalize_step.2} parent=0
    _
  %s4 = ssub.s32 1, %s2
  %s5 = scalar_select 0, %s4, %s2
  loop: start=0, step=1, limit=4
  $region2: #{_normalize_step.2} parent=0 // loop_pre_header
    _
  $region3: #{_normalize_step.2} parent=0 // loop_header
    %s7 = sphi 0, %s11
    %p8 = scmp.ge.s32.totalorder %s7, 4
    %s14 = sphi 0, %s26
    %s15 = sphi 0, %s22
    %s16 = sphi 0, %s14
    %s17 = sphi 0, %s15
    %s18 = sphi 0, %s16
    %s19 = sphi 0, %s17
    %s31 = sphi 0, %s33
    %s34 = sphi 0, %s31
    %s35 = sphi 0, %s34
    %s51 = sphi 0, %s35
    %s57 = sphi 0, %s59
    %s60 = sphi 0, %s57
    %s61 = sphi 0, %s60
    %s77 = sphi 0, %s61
  $region4: #{_normalize_step.2} parent=0 // loop_header_branch
    %10 = sbr.rel (%p8) target = $region8
  $region5: #{_normalize_step.2} parent=0 // loop_body
    %s12 = ssub.s32 %s7, 1
    %s13 = ssub.s32 %s7, 2
    %s20 = sadd.s32 1, %s15
    %p21 = scmp.ge.s32.totalorder %s20, 1
    %s22 = scalar_select %p21, 0, %s20
    %s23 = sadd.s32 1, %s14
    %s24 = scalar_select %p21, %s23, %s14
    %p25 = scmp.ge.s32.totalorder %s24, 2
    %s26 = scalar_select %p25, 0, %s24
    %s27 = sadd.s32 %s14, %s15
    %s28 = sadd.s32 %s26, %s22
    %s29 = ssub.s32 %s27, %s28
    %p30 = scmp.eq.s32.totalorder %s29, 0
    %s32 = sadd.s32 %s31, 1
    %s33 = scalar_select %p30, %s31, %s32
    %p36 = pneg %p30
    %p37 = scmp.eq.s32.totalorder %s7, 1
    %p38 = por %p36, %p37
    %p39 = scmp.ne.s32.totalorder %s31, %s34
    %p40 = scmp.eq.s32.totalorder %s7, 0
    %p41 = por %p39, %p40
    %p42 = scmp.ne.s32.totalorder %s31, %s34
    %p43 = scmp.eq.s32.totalorder %s12, 1
    %p44 = por %p42, %p43
    %p45 = scmp.ne.s32.totalorder %s34, %s35
    %p46 = scmp.eq.s32.totalorder %s12, 0
    %p47 = por %p45, %p46
    %p48 = scmp.ne.s32.totalorder %s34, %s35
    %p49 = scmp.eq.s32.totalorder %s13, 1
    %p50 = por %p48, %p49
    %p52 = scmp.ne.s32.totalorder %s35, %s51
    %p53 = scmp.eq.s32.totalorder %s13, 0
    %p54 = por %p52, %p53
    %s55 = ssub.s32 %s14, %s26
    %p56 = scmp.eq.s32.totalorder %s55, 0
    %s58 = sadd.s32 %s57, 1
    %s59 = scalar_select %p56, %s57, %s58
    %p62 = pneg %p56
    %p63 = scmp.eq.s32.totalorder %s7, 1
    %p64 = por %p62, %p63
    %p65 = scmp.ne.s32.totalorder %s57, %s60
    %p66 = scmp.eq.s32.totalorder %s7, 0
    %p67 = por %p65, %p66
    %p68 = scmp.ne.s32.totalorder %s57, %s60
    %p69 = scmp.eq.s32.totalorder %s12, 1
    %p70 = por %p68, %p69
    %p71 = scmp.ne.s32.totalorder %s60, %s61
    %p72 = scmp.eq.s32.totalorder %s12, 0
    %p73 = por %p71, %p72
    %p74 = scmp.ne.s32.totalorder %s60, %s61
    %p75 = scmp.eq.s32.totalorder %s13, 1
    %p76 = por %p74, %p75
    %p78 = scmp.ne.s32.totalorder %s61, %s77
    %p79 = scmp.eq.s32.totalorder %s13, 0
    %p80 = por %p78, %p79
    %p81 = scmp.le.s32.totalorder 1, %s7
    %p82 = scmp.lt.s32.totalorder %s7, 3
    %p83 = pnand %p81, %p82
    %p84 = pneg %p83
    // Predicated region
    $region9: #{_normalize_step.2} parent=5 // pred_check
      _
    $region10: #{_normalize_step.2} parent=5 // pred_check_branch
      %86 = sbr.rel (%p83) target = $region12
    $region11: #{_normalize_step.2} parent=5 // pred_region
      %s87 = ssub.s32 %s7, 1
    $region12: #{_normalize_step.2} parent=5 // pred_fallthru
      _
    %p88 = scmp.lt.s32.totalorder %s7, 2
    // Predicated region
    $region13: #{_normalize_step.2} parent=5 // pred_check
      %p89 = pneg %p88
    $region14: #{_normalize_step.2} parent=5 // pred_check_branch
      %91 = sbr.rel (%p89) target = $region16
    $region15: #{_normalize_step.2} parent=5 // pred_region
      // Predicated region
      $region17: #{_normalize_step.2} parent=15 // pred_check
        %p92 = pneg %p41
      $region18: #{_normalize_step.2} parent=15 // pred_check_branch
        %94 = sbr.rel (%p92) target = $region20
      $region19: #{_normalize_step.2} parent=15 // pred_region
        %s95 = sadd.s32 %s14, %s15
        %s96 = smul.u32 128, %s95
        %p97 = scmp.lt.s32.totalorder %s96, 255
        %s98 = scalar_select %p97, %s96, 255
        %s99 = smul.addr %s98, 8
        %s100 = scalar_lea.vmem %s0, %s99
        %s101 = sadd.s32 %s14, %s15
        %s102 = smul.u32 128, %s101
      $region20: #{_normalize_step.2} parent=15 // pred_fallthru
        _
    $region16: #{_normalize_step.2} parent=5 // pred_fallthru
      _
    %p103 = scmp.le.s32.totalorder 1, %s7
    %p104 = scmp.lt.s32.totalorder %s7, 3
    %p105 = pnand %p103, %p104
    %p106 = pneg %p105
    // Predicated region
    $region21: #{_normalize_step.2} parent=5 // pred_check
      _
    $region22: #{_normalize_step.2} parent=5 // pred_check_branch
      %108 = sbr.rel (%p105) target = $region24
    $region23: #{_normalize_step.2} parent=5 // pred_region
      %s109 = ssub.s32 %s7, 1
      %s110 = sadd.s32 %s16, %s17
      %s111 = smul.u32 128, %s110
      %p112 = scmp.lt.s32.totalorder %s111, 255
      %s113 = scalar_select %p112, %s111, 255
      %s114 = smul.addr %s113, 8
      %s115 = scalar_lea.vmem %s0, %s114
      %p116 = pneg %p47
      %p117 = pneg %p44
      %p118 = pneg %p73
      %p119 = pneg %p70
      %p120 = scmp.lt.s32.totalorder %s16, 1
      %s121 = scalar_select %p120, %s16, 1
      %s122 = smul.addr %s121, 8
      %s123 = scalar_lea.vmem %s1, %s122
      %s124 = sadd.s32 %s16, %s17
      %s125 = smul.u32 128, %s124
      %p126 = scmp.lt.s32.totalorder %s125, 255
      %s127 = scalar_select %p126, %s125, 255
      %s128 = smul.addr %s127, 8
      %s129 = scalar_lea.vmem %s0, %s128
      %s130 = sadd.s32 %s16, %s17
      %s131 = smul.u32 128, %s130
      %p132 = scmp.lt.s32.totalorder %s16, 1
      %s133 = scalar_select %p132, %s16, 1
      %s134 = smul.addr %s133, 8
      %s135 = scalar_lea.vmem %s1, %s134
      %p136 = scmp.eq.s32.totalorder %s17, 0
      // Predicated region
      $region25: #{_normalize_step.2} parent=23 // pred_check
        %p137 = pneg %p136
      $region26: #{_normalize_step.2} parent=23 // pred_check_branch
        %139 = sbr.rel (%p137) target = $region28
      $region27: #{_normalize_step.2} parent=23 // pred_region
        %140 = vst [vmem:[%s135] sm:$0xff] 0.0
      $region28: #{_normalize_step.2} parent=23 // pred_fallthru
        _
      %v141 = vld [vmem:[%s129] sm:$0xff]
      %v142 = vld [vmem:[%s129 + $0x8] sm:$0xff]
      %v143 = vld [vmem:[%s129 + $0x10] sm:$0xff]
      %v144 = vld [vmem:[%s129 + $0x18] sm:$0xff]
      %v145 = vld [vmem:[%s129 + $0x20] sm:$0xff]
      %v146 = vld [vmem:[%s129 + $0x28] sm:$0xff]
      %v147 = vld [vmem:[%s129 + $0x30] sm:$0xff]
      %v148 = vld [vmem:[%s129 + $0x38] sm:$0xff]
      %v149 = vld [vmem:[%s129 + $0x40] sm:$0xff]
      %v150 = vld [vmem:[%s129 + $0x48] sm:$0xff]
      %v151 = vld [vmem:[%s129 + $0x50] sm:$0xff]
      %v152 = vld [vmem:[%s129 + $0x58] sm:$0xff]
      %v153 = vld [vmem:[%s129 + $0x60] sm:$0xff]
      %v154 = vld [vmem:[%s129 + $0x68] sm:$0xff]
      %v155 = vld [vmem:[%s129 + $0x70] sm:$0xff]
      %v156 = vld [vmem:[%s129 + $0x78] sm:$0xff]
      %v157 = vld [vmem:[%s129 + $0x80] sm:$0xff]
      %v158 = vld [vmem:[%s129 + $0x88] sm:$0xff]
      %v159 = vld [vmem:[%s129 + $0x90] sm:$0xff]
      %v160 = vld [vmem:[%s129 + $0x98] sm:$0xff]
      %v161 = vld [vmem:[%s129 + $0xa0] sm:$0xff]
      %v162 = vld [vmem:[%s129 + $0xa8] sm:$0xff]
      %v163 = vld [vmem:[%s129 + $0xb0] sm:$0xff]
      %v164 = vld [vmem:[%s129 + $0xb8] sm:$0xff]
      %v165 = vld [vmem:[%s129 + $0xc0] sm:$0xff]
      %v166 = vld [vmem:[%s129 + $0xc8] sm:$0xff]
      %v167 = vld [vmem:[%s129 + $0xd0] sm:$0xff]
      %v168 = vld [vmem:[%s129 + $0xd8] sm:$0xff]
      %v169 = vld [vmem:[%s129 + $0xe0] sm:$0xff]
      %v170 = vld [vmem:[%s129 + $0xe8] sm:$0xff]
      %v171 = vld [vmem:[%s129 + $0xf0] sm:$0xff]
      %v172 = vld [vmem:[%s129 + $0xf8] sm:$0xff]
      %v173 = vld [vmem:[%s129 + $0x100] sm:$0xff]
      %v174 = vld [vmem:[%s129 + $0x108] sm:$0xff]
      %v175 = vld [vmem:[%s129 + $0x110] sm:$0xff]
      %v176 = vld [vmem:[%s129 + $0x118] sm:$0xff]
      %v177 = vld [vmem:[%s129 + $0x120] sm:$0xff]
      %v178 = vld [vmem:[%s129 + $0x128] sm:$0xff]
      %v179 = vld [vmem:[%s129 + $0x130] sm:$0xff]
      %v180 = vld [vmem:[%s129 + $0x138] sm:$0xff]
      %v181 = vld [vmem:[%s129 + $0x140] sm:$0xff]
      %v182 = vld [vmem:[%s129 + $0x148] sm:$0xff]
      %v183 = vld [vmem:[%s129 + $0x150] sm:$0xff]
      %v184 = vld [vmem:[%s129 + $0x158] sm:$0xff]
      %v185 = vld [vmem:[%s129 + $0x160] sm:$0xff]
      %v186 = vld [vmem:[%s129 + $0x168] sm:$0xff]
      %v187 = vld [vmem:[%s129 + $0x170] sm:$0xff]
      %v188 = vld [vmem:[%s129 + $0x178] sm:$0xff]
      %v189 = vld [vmem:[%s129 + $0x180] sm:$0xff]
      %v190 = vld [vmem:[%s129 + $0x188] sm:$0xff]
      %v191 = vld [vmem:[%s129 + $0x190] sm:$0xff]
      %v192 = vld [vmem:[%s129 + $0x198] sm:$0xff]
      %v193 = vld [vmem:[%s129 + $0x1a0] sm:$0xff]
      %v194 = vld [vmem:[%s129 + $0x1a8] sm:$0xff]
      %v195 = vld [vmem:[%s129 + $0x1b0] sm:$0xff]
      %v196 = vld [vmem:[%s129 + $0x1b8] sm:$0xff]
      %v197 = vld [vmem:[%s129 + $0x1c0] sm:$0xff]
      %v198 = vld [vmem:[%s129 + $0x1c8] sm:$0xff]
      %v199 = vld [vmem:[%s129 + $0x1d0] sm:$0xff]
      %v200 = vld [vmem:[%s129 + $0x1d8] sm:$0xff]
      %v201 = vld [vmem:[%s129 + $0x1e0] sm:$0xff]
      %v202 = vld [vmem:[%s129 + $0x1e8] sm:$0xff]
      %v203 = vld [vmem:[%s129 + $0x1f0] sm:$0xff]
      %v204 = vld [vmem:[%s129 + $0x1f8] sm:$0xff]
      %v205 = vld [vmem:[%s129 + $0x200] sm:$0xff]
      %v206 = vld [vmem:[%s129 + $0x208] sm:$0xff]
      %v207 = vld [vmem:[%s129 + $0x210] sm:$0xff]
      %v208 = vld [vmem:[%s129 + $0x218] sm:$0xff]
      %v209 = vld [vmem:[%s129 + $0x220] sm:$0xff]
      %v210 = vld [vmem:[%s129 + $0x228] sm:$0xff]
      %v211 = vld [vmem:[%s129 + $0x230] sm:$0xff]
      %v212 = vld [vmem:[%s129 + $0x238] sm:$0xff]
      %v213 = vld [vmem:[%s129 + $0x240] sm:$0xff]
      %v214 = vld [vmem:[%s129 + $0x248] sm:$0xff]
      %v215 = vld [vmem:[%s129 + $0x250] sm:$0xff]
      %v216 = vld [vmem:[%s129 + $0x258] sm:$0xff]
      %v217 = vld [vmem:[%s129 + $0x260] sm:$0xff]
      %v218 = vld [vmem:[%s129 + $0x268] sm:$0xff]
      %v219 = vld [vmem:[%s129 + $0x270] sm:$0xff]
      %v220 = vld [vmem:[%s129 + $0x278] sm:$0xff]
      %v221 = vld [vmem:[%s129 + $0x280] sm:$0xff]
      %v222 = vld [vmem:[%s129 + $0x288] sm:$0xff]
      %v223 = vld [vmem:[%s129 + $0x290] sm:$0xff]
      %v224 = vld [vmem:[%s129 + $0x298] sm:$0xff]
      %v225 = vld [vmem:[%s129 + $0x2a0] sm:$0xff]
      %v226 = vld [vmem:[%s129 + $0x2a8] sm:$0xff]
      %v227 = vld [vmem:[%s129 + $0x2b0] sm:$0xff]
      %v228 = vld [vmem:[%s129 + $0x2b8] sm:$0xff]
      %v229 = vld [vmem:[%s129 + $0x2c0] sm:$0xff]
      %v230 = vld [vmem:[%s129 + $0x2c8] sm:$0xff]
      %v231 = vld [vmem:[%s129 + $0x2d0] sm:$0xff]
      %v232 = vld [vmem:[%s129 + $0x2d8] sm:$0xff]
      %v233 = vld [vmem:[%s129 + $0x2e0] sm:$0xff]
      %v234 = vld [vmem:[%s129 + $0x2e8] sm:$0xff]
      %v235 = vld [vmem:[%s129 + $0x2f0] sm:$0xff]
      %v236 = vld [vmem:[%s129 + $0x2f8] sm:$0xff]
      %v237 = vld [vmem:[%s129 + $0x300] sm:$0xff]
      %v238 = vld [vmem:[%s129 + $0x308] sm:$0xff]
      %v239 = vld [vmem:[%s129 + $0x310] sm:$0xff]
      %v240 = vld [vmem:[%s129 + $0x318] sm:$0xff]
      %v241 = vld [vmem:[%s129 + $0x320] sm:$0xff]
      %v242 = vld [vmem:[%s129 + $0x328] sm:$0xff]
      %v243 = vld [vmem:[%s129 + $0x330] sm:$0xff]
      %v244 = vld [vmem:[%s129 + $0x338] sm:$0xff]
      %v245 = vld [vmem:[%s129 + $0x340] sm:$0xff]
      %v246 = vld [vmem:[%s129 + $0x348] sm:$0xff]
      %v247 = vld [vmem:[%s129 + $0x350] sm:$0xff]
      %v248 = vld [vmem:[%s129 + $0x358] sm:$0xff]
      %v249 = vld [vmem:[%s129 + $0x360] sm:$0xff]
      %v250 = vld [vmem:[%s129 + $0x368] sm:$0xff]
      %v251 = vld [vmem:[%s129 + $0x370] sm:$0xff]
      %v252 = vld [vmem:[%s129 + $0x378] sm:$0xff]
      %v253 = vld [vmem:[%s129 + $0x380] sm:$0xff]
      %v254 = vld [vmem:[%s129 + $0x388] sm:$0xff]
      %v255 = vld [vmem:[%s129 + $0x390] sm:$0xff]
      %v256 = vld [vmem:[%s129 + $0x398] sm:$0xff]
      %v257 = vld [vmem:[%s129 + $0x3a0] sm:$0xff]
      %v258 = vld [vmem:[%s129 + $0x3a8] sm:$0xff]
      %v259 = vld [vmem:[%s129 + $0x3b0] sm:$0xff]
      %v260 = vld [vmem:[%s129 + $0x3b8] sm:$0xff]
      %v261 = vld [vmem:[%s129 + $0x3c0] sm:$0xff]
      %v262 = vld [vmem:[%s129 + $0x3c8] sm:$0xff]
      %v263 = vld [vmem:[%s129 + $0x3d0] sm:$0xff]
      %v264 = vld [vmem:[%s129 + $0x3d8] sm:$0xff]
      %v265 = vld [vmem:[%s129 + $0x3e0] sm:$0xff]
      %v266 = vld [vmem:[%s129 + $0x3e8] sm:$0xff]
      %v267 = vld [vmem:[%s129 + $0x3f0] sm:$0xff]
      %v268 = vld [vmem:[%s129 + $0x3f8] sm:$0xff]
      %v269 = vld [vmem:[%s135] sm:$0xff]
      %v270 = vmul.f32 %v141, %v141
      %v271 = vmul.f32 %v142, %v142
      %v272 = vmul.f32 %v143, %v143
      %v273 = vmul.f32 %v144, %v144
      %v274 = vmul.f32 %v145, %v145
      %v275 = vmul.f32 %v146, %v146
      %v276 = vmul.f32 %v147, %v147
      %v277 = vmul.f32 %v148, %v148
      %v278 = vmul.f32 %v149, %v149
      %v279 = vmul.f32 %v150, %v150
      %v280 = vmul.f32 %v151, %v151
      %v281 = vmul.f32 %v152, %v152
      %v282 = vmul.f32 %v153, %v153
      %v283 = vmul.f32 %v154, %v154
      %v284 = vmul.f32 %v155, %v155
      %v285 = vmul.f32 %v156, %v156
      %v286 = vmul.f32 %v157, %v157
      %v287 = vmul.f32 %v158, %v158
      %v288 = vmul.f32 %v159, %v159
      %v289 = vmul.f32 %v160, %v160
      %v290 = vmul.f32 %v161, %v161
      %v291 = vmul.f32 %v162, %v162
      %v292 = vmul.f32 %v163, %v163
      %v293 = vmul.f32 %v164, %v164
      %v294 = vmul.f32 %v165, %v165
      %v295 = vmul.f32 %v166, %v166
      %v296 = vmul.f32 %v167, %v167
      %v297 = vmul.f32 %v168, %v168
      %v298 = vmul.f32 %v169, %v169
      %v299 = vmul.f32 %v170, %v170
      %v300 = vmul.f32 %v171, %v171
      %v301 = vmul.f32 %v172, %v172
      %v302 = vmul.f32 %v173, %v173
      %v303 = vmul.f32 %v174, %v174
      %v304 = vmul.f32 %v175, %v175
      %v305 = vmul.f32 %v176, %v176
      %v306 = vmul.f32 %v177, %v177
      %v307 = vmul.f32 %v178, %v178
      %v308 = vmul.f32 %v179, %v179
      %v309 = vmul.f32 %v180, %v180
      %v310 = vmul.f32 %v181, %v181
      %v311 = vmul.f32 %v182, %v182
      %v312 = vmul.f32 %v183, %v183
      %v313 = vmul.f32 %v184, %v184
      %v314 = vmul.f32 %v185, %v185
      %v315 = vmul.f32 %v186, %v186
      %v316 = vmul.f32 %v187, %v187
      %v317 = vmul.f32 %v188, %v188
      %v318 = vmul.f32 %v189, %v189
      %v319 = vmul.f32 %v190, %v190
      %v320 = vmul.f32 %v191, %v191
      %v321 = vmul.f32 %v192, %v192
      %v322 = vmul.f32 %v193, %v193
      %v323 = vmul.f32 %v194, %v194
      %v324 = vmul.f32 %v195, %v195
      %v325 = vmul.f32 %v196, %v196
      %v326 = vmul.f32 %v197, %v197
      %v327 = vmul.f32 %v198, %v198
      %v328 = vmul.f32 %v199, %v199
      %v329 = vmul.f32 %v200, %v200
      %v330 = vmul.f32 %v201, %v201
      %v331 = vmul.f32 %v202, %v202
      %v332 = vmul.f32 %v203, %v203
      %v333 = vmul.f32 %v204, %v204
      %v334 = vmul.f32 %v205, %v205
      %v335 = vmul.f32 %v206, %v206
      %v336 = vmul.f32 %v207, %v207
      %v337 = vmul.f32 %v208, %v208
      %v338 = vmul.f32 %v209, %v209
      %v339 = vmul.f32 %v210, %v210
      %v340 = vmul.f32 %v211, %v211
      %v341 = vmul.f32 %v212, %v212
      %v342 = vmul.f32 %v213, %v213
      %v343 = vmul.f32 %v214, %v214
      %v344 = vmul.f32 %v215, %v215
      %v345 = vmul.f32 %v216, %v216
      %v346 = vmul.f32 %v217, %v217
      %v347 = vmul.f32 %v218, %v218
      %v348 = vmul.f32 %v219, %v219
      %v349 = vmul.f32 %v220, %v220
      %v350 = vmul.f32 %v221, %v221
      %v351 = vmul.f32 %v222, %v222
      %v352 = vmul.f32 %v223, %v223
      %v353 = vmul.f32 %v224, %v224
      %v354 = vmul.f32 %v225, %v225
      %v355 = vmul.f32 %v226, %v226
      %v356 = vmul.f32 %v227, %v227
      %v357 = vmul.f32 %v228, %v228
      %v358 = vmul.f32 %v229, %v229
      %v359 = vmul.f32 %v230, %v230
      %v360 = vmul.f32 %v231, %v231
      %v361 = vmul.f32 %v232, %v232
      %v362 = vmul.f32 %v233, %v233
      %v363 = vmul.f32 %v234, %v234
      %v364 = vmul.f32 %v235, %v235
      %v365 = vmul.f32 %v236, %v236
      %v366 = vmul.f32 %v237, %v237
      %v367 = vmul.f32 %v238, %v238
      %v368 = vmul.f32 %v239, %v239
      %v369 = vmul.f32 %v240, %v240
      %v370 = vmul.f32 %v241, %v241
      %v371 = vmul.f32 %v242, %v242
      %v372 = vmul.f32 %v243, %v243
      %v373 = vmul.f32 %v244, %v244
      %v374 = vmul.f32 %v245, %v245
      %v375 = vmul.f32 %v246, %v246
      %v376 = vmul.f32 %v247, %v247
      %v377 = vmul.f32 %v248, %v248
      %v378 = vmul.f32 %v249, %v249
      %v379 = vmul.f32 %v250, %v250
      %v380 = vmul.f32 %v251, %v251
      %v381 = vmul.f32 %v252, %v252
      %v382 = vmul.f32 %v253, %v253
      %v383 = vmul.f32 %v254, %v254
      %v384 = vmul.f32 %v255, %v255
      %v385 = vmul.f32 %v256, %v256
      %v386 = vmul.f32 %v257, %v257
      %v387 = vmul.f32 %v258, %v258
      %v388 = vmul.f32 %v259, %v259
      %v389 = vmul.f32 %v260, %v260
      %v390 = vmul.f32 %v261, %v261
      %v391 = vmul.f32 %v262, %v262
      %v392 = vmul.f32 %v263, %v263
      %v393 = vmul.f32 %v264, %v264
      %v394 = vmul.f32 %v265, %v265
      %v395 = vmul.f32 %v266, %v266
      %v396 = vmul.f32 %v267, %v267
      %v397 = vmul.f32 %v268, %v268
      %v398 = vadd.f32 %v270, %v271
      %v399 = vadd.f32 %v398, %v272
      %v400 = vadd.f32 %v399, %v273
      %v401 = vadd.f32 %v400, %v274
      %v402 = vadd.f32 %v401, %v275
      %v403 = vadd.f32 %v402, %v276
      %v404 = vadd.f32 %v403, %v277
      %v405 = vadd.f32 %v404, %v278
      %v406 = vadd.f32 %v405, %v279
      %v407 = vadd.f32 %v406, %v280
      %v408 = vadd.f32 %v407, %v281
      %v409 = vadd.f32 %v408, %v282
      %v410 = vadd.f32 %v409, %v283
      %v411 = vadd.f32 %v410, %v284
      %v412 = vadd.f32 %v411, %v285
      %v413 = vadd.f32 %v412, %v286
      %v414 = vadd.f32 %v413, %v287
      %v415 = vadd.f32 %v414, %v288
      %v416 = vadd.f32 %v415, %v289
      %v417 = vadd.f32 %v416, %v290
      %v418 = vadd.f32 %v417, %v291
      %v419 = vadd.f32 %v418, %v292
      %v420 = vadd.f32 %v419, %v293
      %v421 = vadd.f32 %v420, %v294
      %v422 = vadd.f32 %v421, %v295
      %v423 = vadd.f32 %v422, %v296
      %v424 = vadd.f32 %v423, %v297
      %v425 = vadd.f32 %v424, %v298
      %v426 = vadd.f32 %v425, %v299
      %v427 = vadd.f32 %v426, %v300
      %v428 = vadd.f32 %v427, %v301
      %v429 = vadd.f32 %v428, %v302
      %v430 = vadd.f32 %v429, %v303
      %v431 = vadd.f32 %v430, %v304
      %v432 = vadd.f32 %v431, %v305
      %v433 = vadd.f32 %v432, %v306
      %v434 = vadd.f32 %v433, %v307
      %v435 = vadd.f32 %v434, %v308
      %v436 = vadd.f32 %v435, %v309
      %v437 = vadd.f32 %v436, %v310
      %v438 = vadd.f32 %v437, %v311
      %v439 = vadd.f32 %v438, %v312
      %v440 = vadd.f32 %v439, %v313
      %v441 = vadd.f32 %v440, %v314
      %v442 = vadd.f32 %v441, %v315
      %v443 = vadd.f32 %v442, %v316
      %v444 = vadd.f32 %v443, %v317
      %v445 = vadd.f32 %v444, %v318
      %v446 = vadd.f32 %v445, %v319
      %v447 = vadd.f32 %v446, %v320
      %v448 = vadd.f32 %v447, %v321
      %v449 = vadd.f32 %v448, %v322
      %v450 = vadd.f32 %v449, %v323
      %v451 = vadd.f32 %v450, %v324
      %v452 = vadd.f32 %v451, %v325
      %v453 = vadd.f32 %v452, %v326
      %v454 = vadd.f32 %v453, %v327
      %v455 = vadd.f32 %v454, %v328
      %v456 = vadd.f32 %v455, %v329
      %v457 = vadd.f32 %v456, %v330
      %v458 = vadd.f32 %v457, %v331
      %v459 = vadd.f32 %v458, %v332
      %v460 = vadd.f32 %v459, %v333
      %v461 = vadd.f32 %v460, %v334
      %v462 = vadd.f32 %v461, %v335
      %v463 = vadd.f32 %v462, %v336
      %v464 = vadd.f32 %v463, %v337
      %v465 = vadd.f32 %v464, %v338
      %v466 = vadd.f32 %v465, %v339
      %v467 = vadd.f32 %v466, %v340
      %v468 = vadd.f32 %v467, %v341
      %v469 = vadd.f32 %v468, %v342
      %v470 = vadd.f32 %v469, %v343
      %v471 = vadd.f32 %v470, %v344
      %v472 = vadd.f32 %v471, %v345
      %v473 = vadd.f32 %v472, %v346
      %v474 = vadd.f32 %v473, %v347
      %v475 = vadd.f32 %v474, %v348
      %v476 = vadd.f32 %v475, %v349
      %v477 = vadd.f32 %v476, %v350
      %v478 = vadd.f32 %v477, %v351
      %v479 = vadd.f32 %v478, %v352
      %v480 = vadd.f32 %v479, %v353
      %v481 = vadd.f32 %v480, %v354
      %v482 = vadd.f32 %v481, %v355
      %v483 = vadd.f32 %v482, %v356
      %v484 = vadd.f32 %v483, %v357
      %v485 = vadd.f32 %v484, %v358
      %v486 = vadd.f32 %v485, %v359
      %v487 = vadd.f32 %v486, %v360
      %v488 = vadd.f32 %v487, %v361
      %v489 = vadd.f32 %v488, %v362
      %v490 = vadd.f32 %v489, %v363
      %v491 = vadd.f32 %v490, %v364
      %v492 = vadd.f32 %v491, %v365
      %v493 = vadd.f32 %v492, %v366
      %v494 = vadd.f32 %v493, %v367
      %v495 = vadd.f32 %v494, %v368
      %v496 = vadd.f32 %v495, %v369
      %v497 = vadd.f32 %v496, %v370
      %v498 = vadd.f32 %v497, %v371
      %v499 = vadd.f32 %v498, %v372
      %v500 = vadd.f32 %v499, %v373
      %v501 = vadd.f32 %v500, %v374
      %v502 = vadd.f32 %v501, %v375
      %v503 = vadd.f32 %v502, %v376
      %v504 = vadd.f32 %v503, %v377
      %v505 = vadd.f32 %v504, %v378
      %v506 = vadd.f32 %v505, %v379
      %v507 = vadd.f32 %v506, %v380
      %v508 = vadd.f32 %v507, %v381
      %v509 = vadd.f32 %v508, %v382
      %v510 = vadd.f32 %v509, %v383
      %v511 = vadd.f32 %v510, %v384
      %v512 = vadd.f32 %v511, %v385
      %v513 = vadd.f32 %v512, %v386
      %v514 = vadd.f32 %v513, %v387
      %v515 = vadd.f32 %v514, %v388
      %v516 = vadd.f32 %v515, %v389
      %v517 = vadd.f32 %v516, %v390
      %v518 = vadd.f32 %v517, %v391
      %v519 = vadd.f32 %v518, %v392
      %v520 = vadd.f32 %v519, %v393
      %v521 = vadd.f32 %v520, %v394
      %v522 = vadd.f32 %v521, %v395
      %v523 = vadd.f32 %v522, %v396
      %v524 = vadd.f32 %v523, %v397
      %v525 = vadd.f32 %v269, %v524
      %526 = vst [vmem:[%s135] sm:$0xff] %v525
      %p527 = scmp.lt.s32.totalorder %s16, 1
      %s528 = scalar_select %p527, %s16, 1
      %s529 = smul.addr %s528, 8
      %s530 = scalar_lea.vmem %s1, %s529
      // Predicated region
      $region29: #{_normalize_step.2} parent=23 // pred_check
        %p531 = pneg %p70
      $region30: #{_normalize_step.2} parent=23 // pred_check_branch
        %533 = sbr.rel (%p531) target = $region32
      $region31: #{_normalize_step.2} parent=23 // pred_region
        _
      $region32: #{_normalize_step.2} parent=23 // pred_fallthru
        _
    $region24: #{_normalize_step.2} parent=5 // pred_fallthru
      _
    %p534 = scmp.le.s32.totalorder 2, %s7
    // Predicated region
    $region33: #{_normalize_step.2} parent=5 // pred_check
      %p535 = pneg %p534
    $region34: #{_normalize_step.2} parent=5 // pred_check_branch
      %537 = sbr.rel (%p535) target = $region36
    $region35: #{_normalize_step.2} parent=5 // pred_region
      %s538 = ssub.s32 %s7, 2
      // Predicated region
      $region37: #{_normalize_step.2} parent=35 // pred_check
        %p539 = pneg %p76
      $region38: #{_normalize_step.2} parent=35 // pred_check_branch
        %541 = sbr.rel (%p539) target = $region40
      $region39: #{_normalize_step.2} parent=35 // pred_region
        %p542 = scmp.lt.s32.totalorder %s18, 1
        %s543 = scalar_select %p542, %s18, 1
        %s544 = smul.addr %s543, 8
        %s545 = scalar_lea.vmem %s1, %s544
      $region40: #{_normalize_step.2} parent=35 // pred_fallthru
        _
    $region36: #{_normalize_step.2} parent=5 // pred_fallthru
      _
  $region6: #{_normalize_step.2} parent=0 // loop_footer
    %s11 = sadd.s32 1, %s7
  $region7: #{_normalize_step.2} parent=0 // loop_footer_branch
    %6 = sbr.rel target = $region3
  $region8: #{_normalize_step.2} parent=0 // loop_exit
    _

// kernel: _normalize_step.3
$region0: #{_normalize_step.3}
  #allocation0 [shape = 'u32[]', space=smem, size = 0x4, offset = 0x4, fixed_abs, tag = 'smem constant byte address 0x4 - core index']
  #allocation1 [shape = 'u32[72,128]{1,0:T(1,128)}', space=vmem, size = 0x9000, scoped, tag = 'internal scratch']
  #allocation2 [shape = 'f32[1]{0:T(128)S(6)}', space=smem, size = 0x200, scoped, tag = 'scoped memory for _normalize_step.3']
  %s0 = inlined_call_operand.<no memory space> [shape: f32[1], index: 0, kind: input, shape index: {}]
  %s1 = inlined_call_operand.vmem [shape: f32[256,8,128], index: 1, kind: input, shape index: {}]
  %s2 = inlined_call_operand.vmem [shape: f32[256,8,128], index: 2, kind: output, shape index: {}]
  %s3 = sld [smem:[#allocation0]]
  $region41: #{_normalize_step.3} parent=0
    _
  %s5 = ssub.s32 1, %s3
  %s6 = scalar_select 0, %s5, %s3
  %7 = sst [smem:[#allocation2]] %s0
  loop: start=0, step=1, limit=4
  $region2: #{_normalize_step.3} parent=0 // loop_pre_header
    _
  $region3: #{_normalize_step.3} parent=0 // loop_header
    %s9 = sphi 0, %s13
    %p10 = scmp.ge.s32.totalorder %s9, 4
    %s17 = sphi 0, %s17
    %s19 = sphi 0, %s17
    %s20 = sphi 0, %s19
    %s34 = sphi 0, %s20
    %s40 = sphi 0, %s42
    %s43 = sphi 0, %s40
    %s44 = sphi 0, %s43
    %s60 = sphi 0, %s44
    %s66 = sphi 0, %s68
    %s69 = sphi 0, %s66
    %s70 = sphi 0, %s69
    %s86 = sphi 0, %s70
  $region4: #{_normalize_step.3} parent=0 // loop_header_branch
    %12 = sbr.rel (%p10) target = $region8
  $region5: #{_normalize_step.3} parent=0 // loop_body
    %s14 = ssub.s32 %s9, 1
    %s15 = ssub.s32 %s9, 2
    %s16 = sadd.s32 %s9, 1
    %s18 = sadd.s32 %s17, 1
    %p21 = scmp.eq.s32.totalorder %s9, 1
    %p22 = scmp.ne.s32.totalorder %s17, %s19
    %p23 = scmp.eq.s32.totalorder %s9, 0
    %p24 = por %p22, %p23
    %p25 = scmp.ne.s32.totalorder %s17, %s19
    %p26 = scmp.eq.s32.totalorder %s14, 1
    %p27 = por %p25, %p26
    %p28 = scmp.ne.s32.totalorder %s19, %s20
    %p29 = scmp.eq.s32.totalorder %s14, 0
    %p30 = por %p28, %p29
    %p31 = scmp.ne.s32.totalorder %s19, %s20
    %p32 = scmp.eq.s32.totalorder %s15, 1
    %p33 = por %p31, %p32
    %p35 = scmp.ne.s32.totalorder %s20, %s34
    %p36 = scmp.eq.s32.totalorder %s15, 0
    %p37 = por %p35, %p36
    %s38 = ssub.s32 %s9, %s16
    %p39 = scmp.eq.s32.totalorder %s38, 0
    %s41 = sadd.s32 %s40, 1
    %s42 = scalar_select %p39, %s40, %s41
    %p45 = pneg %p39
    %p46 = scmp.eq.s32.totalorder %s9, 1
    %p47 = por %p45, %p46
    %p48 = scmp.ne.s32.totalorder %s40, %s43
    %p49 = scmp.eq.s32.totalorder %s9, 0
    %p50 = por %p48, %p49
    %p51 = scmp.ne.s32.totalorder %s40, %s43
    %p52 = scmp.eq.s32.totalorder %s14, 1
    %p53 = por %p51, %p52
    %p54 = scmp.ne.s32.totalorder %s43, %s44
    %p55 = scmp.eq.s32.totalorder %s14, 0
    %p56 = por %p54, %p55
    %p57 = scmp.ne.s32.totalorder %s43, %s44
    %p58 = scmp.eq.s32.totalorder %s15, 1
    %p59 = por %p57, %p58
    %p61 = scmp.ne.s32.totalorder %s44, %s60
    %p62 = scmp.eq.s32.totalorder %s15, 0
    %p63 = por %p61, %p62
    %s64 = ssub.s32 %s9, %s16
    %p65 = scmp.eq.s32.totalorder %s64, 0
    %s67 = sadd.s32 %s66, 1
    %s68 = scalar_select %p65, %s66, %s67
    %p71 = pneg %p65
    %p72 = scmp.eq.s32.totalorder %s9, 1
    %p73 = por %p71, %p72
    %p74 = scmp.ne.s32.totalorder %s66, %s69
    %p75 = scmp.eq.s32.totalorder %s9, 0
    %p76 = por %p74, %p75
    %p77 = scmp.ne.s32.totalorder %s66, %s69
    %p78 = scmp.eq.s32.totalorder %s14, 1
    %p79 = por %p77, %p78
    %p80 = scmp.ne.s32.totalorder %s69, %s70
    %p81 = scmp.eq.s32.totalorder %s14, 0
    %p82 = por %p80, %p81
    %p83 = scmp.ne.s32.totalorder %s69, %s70
    %p84 = scmp.eq.s32.totalorder %s15, 1
    %p85 = por %p83, %p84
    %p87 = scmp.ne.s32.totalorder %s70, %s86
    %p88 = scmp.eq.s32.totalorder %s15, 0
    %p89 = por %p87, %p88
    %p90 = scmp.le.s32.totalorder 1, %s9
    %p91 = scmp.lt.s32.totalorder %s9, 3
    %p92 = pnand %p90, %p91
    %p93 = pneg %p92
    // Predicated region
    $region9: #{_normalize_step.3} parent=5 // pred_check
      _
    $region10: #{_normalize_step.3} parent=5 // pred_check_branch
      %95 = sbr.rel (%p92) target = $region12
    $region11: #{_normalize_step.3} parent=5 // pred_region
      %s96 = ssub.s32 %s9, 1
      // Predicated region
      $region13: #{_normalize_step.3} parent=11 // pred_check
        %p97 = pneg %p30
      $region14: #{_normalize_step.3} parent=11 // pred_check_branch
        %99 = sbr.rel (%p97) target = $region16
      $region15: #{_normalize_step.3} parent=11 // pred_region
        _
      $region16: #{_normalize_step.3} parent=11 // pred_fallthru
        _
    $region12: #{_normalize_step.3} parent=5 // pred_fallthru
      _
    %p100 = scmp.lt.s32.totalorder %s9, 2
    // Predicated region
    $region17: #{_normalize_step.3} parent=5 // pred_check
      %p101 = pneg %p100
    $region18: #{_normalize_step.3} parent=5 // pred_check_branch
      %103 = sbr.rel (%p101) target = $region20
    $region19: #{_normalize_step.3} parent=5 // pred_region
      // Predicated region
      $region21: #{_normalize_step.3} parent=19 // pred_check
        %p104 = pneg %p50
      $region22: #{_normalize_step.3} parent=19 // pred_check_branch
        %106 = sbr.rel (%p104) target = $region24
      $region23: #{_normalize_step.3} parent=19 // pred_region
        %s107 = smul.u32 128, %s9
        %p108 = scmp.lt.s32.totalorder %s107, 255
        %s109 = scalar_select %p108, %s107, 255
        %s110 = smul.addr %s109, 8
        %s111 = scalar_lea.vmem %s1, %s110
        %s112 = smul.u32 128, %s9
      $region24: #{_normalize_step.3} parent=19 // pred_fallthru
        _
    $region20: #{_normalize_step.3} parent=5 // pred_fallthru
      _
    %p113 = scmp.le.s32.totalorder 1, %s9
    %p114 = scmp.lt.s32.totalorder %s9, 3
    %p115 = pnand %p113, %p114
    %p116 = pneg %p115
    // Predicated region
    $region25: #{_normalize_step.3} parent=5 // pred_check
      _
    $region26: #{_normalize_step.3} parent=5 // pred_check_branch
      %118 = sbr.rel (%p115) target = $region28
    $region27: #{_normalize_step.3} parent=5 // pred_region
      %s119 = ssub.s32 %s9, 1
      %p120 = pneg %p30
      %p121 = pneg %p27
      %s122 = smul.u32 128, %s14
      %p123 = scmp.lt.s32.totalorder %s122, 255
      %s124 = scalar_select %p123, %s122, 255
      %s125 = smul.addr %s124, 8
      %s126 = scalar_lea.vmem %s1, %s125
      %p127 = pneg %p56
      %p128 = pneg %p53
      %p129 = pneg %p82
      %p130 = pneg %p79
      %s131 = smul.u32 128, %s14
      %p132 = scmp.lt.s32.totalorder %s131, 255
      %s133 = scalar_select %p132, %s131, 255
      %s134 = smul.addr %s133, 8
      %s135 = scalar_lea.vmem %s2, %s134
      %s136 = smul.u32 128, %s14
      %p137 = scmp.lt.s32.totalorder %s136, 255
      %s138 = scalar_select %p137, %s136, 255
      %s139 = smul.addr %s138, 8
      %s140 = scalar_lea.vmem %s1, %s139
      %s141 = smul.u32 128, %s14
      %s142 = smul.u32 128, %s14
      %p143 = scmp.lt.s32.totalorder %s142, 255
      %s144 = scalar_select %p143, %s142, 255
      %s145 = smul.addr %s144, 8
      %s146 = scalar_lea.vmem %s2, %s145
      %s147 = smul.u32 128, %s14
      %v148 = vld [vmem:[%s140] sm:$0xff]
      %v149 = vld [vmem:[%s140 + $0x8] sm:$0xff]
      %v150 = vld [vmem:[%s140 + $0x10] sm:$0xff]
      %v151 = vld [vmem:[%s140 + $0x18] sm:$0xff]
      %v152 = vld [vmem:[%s140 + $0x20] sm:$0xff]
      %v153 = vld [vmem:[%s140 + $0x28] sm:$0xff]
      %v154 = vld [vmem:[%s140 + $0x30] sm:$0xff]
      %v155 = vld [vmem:[%s140 + $0x38] sm:$0xff]
      %v156 = vld [vmem:[%s140 + $0x40] sm:$0xff]
      %v157 = vld [vmem:[%s140 + $0x48] sm:$0xff]
      %v158 = vld [vmem:[%s140 + $0x50] sm:$0xff]
      %v159 = vld [vmem:[%s140 + $0x58] sm:$0xff]
      %v160 = vld [vmem:[%s140 + $0x60] sm:$0xff]
      %v161 = vld [vmem:[%s140 + $0x68] sm:$0xff]
      %v162 = vld [vmem:[%s140 + $0x70] sm:$0xff]
      %v163 = vld [vmem:[%s140 + $0x78] sm:$0xff]
      %v164 = vld [vmem:[%s140 + $0x80] sm:$0xff]
      %v165 = vld [vmem:[%s140 + $0x88] sm:$0xff]
      %v166 = vld [vmem:[%s140 + $0x90] sm:$0xff]
      %v167 = vld [vmem:[%s140 + $0x98] sm:$0xff]
      %v168 = vld [vmem:[%s140 + $0xa0] sm:$0xff]
      %v169 = vld [vmem:[%s140 + $0xa8] sm:$0xff]
      %v170 = vld [vmem:[%s140 + $0xb0] sm:$0xff]
      %v171 = vld [vmem:[%s140 + $0xb8] sm:$0xff]
      %v172 = vld [vmem:[%s140 + $0xc0] sm:$0xff]
      %v173 = vld [vmem:[%s140 + $0xc8] sm:$0xff]
      %v174 = vld [vmem:[%s140 + $0xd0] sm:$0xff]
      %v175 = vld [vmem:[%s140 + $0xd8] sm:$0xff]
      %v176 = vld [vmem:[%s140 + $0xe0] sm:$0xff]
      %v177 = vld [vmem:[%s140 + $0xe8] sm:$0xff]
      %v178 = vld [vmem:[%s140 + $0xf0] sm:$0xff]
      %v179 = vld [vmem:[%s140 + $0xf8] sm:$0xff]
      %v180 = vld [vmem:[%s140 + $0x100] sm:$0xff]
      %v181 = vld [vmem:[%s140 + $0x108] sm:$0xff]
      %v182 = vld [vmem:[%s140 + $0x110] sm:$0xff]
      %v183 = vld [vmem:[%s140 + $0x118] sm:$0xff]
      %v184 = vld [vmem:[%s140 + $0x120] sm:$0xff]
      %v185 = vld [vmem:[%s140 + $0x128] sm:$0xff]
      %v186 = vld [vmem:[%s140 + $0x130] sm:$0xff]
      %v187 = vld [vmem:[%s140 + $0x138] sm:$0xff]
      %v188 = vld [vmem:[%s140 + $0x140] sm:$0xff]
      %v189 = vld [vmem:[%s140 + $0x148] sm:$0xff]
      %v190 = vld [vmem:[%s140 + $0x150] sm:$0xff]
      %v191 = vld [vmem:[%s140 + $0x158] sm:$0xff]
      %v192 = vld [vmem:[%s140 + $0x160] sm:$0xff]
      %v193 = vld [vmem:[%s140 + $0x168] sm:$0xff]
      %v194 = vld [vmem:[%s140 + $0x170] sm:$0xff]
      %v195 = vld [vmem:[%s140 + $0x178] sm:$0xff]
      %v196 = vld [vmem:[%s140 + $0x180] sm:$0xff]
      %v197 = vld [vmem:[%s140 + $0x188] sm:$0xff]
      %v198 = vld [vmem:[%s140 + $0x190] sm:$0xff]
      %v199 = vld [vmem:[%s140 + $0x198] sm:$0xff]
      %v200 = vld [vmem:[%s140 + $0x1a0] sm:$0xff]
      %v201 = vld [vmem:[%s140 + $0x1a8] sm:$0xff]
      %v202 = vld [vmem:[%s140 + $0x1b0] sm:$0xff]
      %v203 = vld [vmem:[%s140 + $0x1b8] sm:$0xff]
      %v204 = vld [vmem:[%s140 + $0x1c0] sm:$0xff]
      %v205 = vld [vmem:[%s140 + $0x1c8] sm:$0xff]
      %v206 = vld [vmem:[%s140 + $0x1d0] sm:$0xff]
      %v207 = vld [vmem:[%s140 + $0x1d8] sm:$0xff]
      %v208 = vld [vmem:[%s140 + $0x1e0] sm:$0xff]
      %v209 = vld [vmem:[%s140 + $0x1e8] sm:$0xff]
      %v210 = vld [vmem:[%s140 + $0x1f0] sm:$0xff]
      %v211 = vld [vmem:[%s140 + $0x1f8] sm:$0xff]
      %v212 = vld [vmem:[%s140 + $0x200] sm:$0xff]
      %v213 = vld [vmem:[%s140 + $0x208] sm:$0xff]
      %v214 = vld [vmem:[%s140 + $0x210] sm:$0xff]
      %v215 = vld [vmem:[%s140 + $0x218] sm:$0xff]
      %v216 = vld [vmem:[%s140 + $0x220] sm:$0xff]
      %v217 = vld [vmem:[%s140 + $0x228] sm:$0xff]
      %v218 = vld [vmem:[%s140 + $0x230] sm:$0xff]
      %v219 = vld [vmem:[%s140 + $0x238] sm:$0xff]
      %v220 = vld [vmem:[%s140 + $0x240] sm:$0xff]
      %v221 = vld [vmem:[%s140 + $0x248] sm:$0xff]
      %v222 = vld [vmem:[%s140 + $0x250] sm:$0xff]
      %v223 = vld [vmem:[%s140 + $0x258] sm:$0xff]
      %v224 = vld [vmem:[%s140 + $0x260] sm:$0xff]
      %v225 = vld [vmem:[%s140 + $0x268] sm:$0xff]
      %v226 = vld [vmem:[%s140 + $0x270] sm:$0xff]
      %v227 = vld [vmem:[%s140 + $0x278] sm:$0xff]
      %v228 = vld [vmem:[%s140 + $0x280] sm:$0xff]
      %v229 = vld [vmem:[%s140 + $0x288] sm:$0xff]
      %v230 = vld [vmem:[%s140 + $0x290] sm:$0xff]
      %v231 = vld [vmem:[%s140 + $0x298] sm:$0xff]
      %v232 = vld [vmem:[%s140 + $0x2a0] sm:$0xff]
      %v233 = vld [vmem:[%s140 + $0x2a8] sm:$0xff]
      %v234 = vld [vmem:[%s140 + $0x2b0] sm:$0xff]
      %v235 = vld [vmem:[%s140 + $0x2b8] sm:$0xff]
      %v236 = vld [vmem:[%s140 + $0x2c0] sm:$0xff]
      %v237 = vld [vmem:[%s140 + $0x2c8] sm:$0xff]
      %v238 = vld [vmem:[%s140 + $0x2d0] sm:$0xff]
      %v239 = vld [vmem:[%s140 + $0x2d8] sm:$0xff]
      %v240 = vld [vmem:[%s140 + $0x2e0] sm:$0xff]
      %v241 = vld [vmem:[%s140 + $0x2e8] sm:$0xff]
      %v242 = vld [vmem:[%s140 + $0x2f0] sm:$0xff]
      %v243 = vld [vmem:[%s140 + $0x2f8] sm:$0xff]
      %v244 = vld [vmem:[%s140 + $0x300] sm:$0xff]
      %v245 = vld [vmem:[%s140 + $0x308] sm:$0xff]
      %v246 = vld [vmem:[%s140 + $0x310] sm:$0xff]
      %v247 = vld [vmem:[%s140 + $0x318] sm:$0xff]
      %v248 = vld [vmem:[%s140 + $0x320] sm:$0xff]
      %v249 = vld [vmem:[%s140 + $0x328] sm:$0xff]
      %v250 = vld [vmem:[%s140 + $0x330] sm:$0xff]
      %v251 = vld [vmem:[%s140 + $0x338] sm:$0xff]
      %v252 = vld [vmem:[%s140 + $0x340] sm:$0xff]
      %v253 = vld [vmem:[%s140 + $0x348] sm:$0xff]
      %v254 = vld [vmem:[%s140 + $0x350] sm:$0xff]
      %v255 = vld [vmem:[%s140 + $0x358] sm:$0xff]
      %v256 = vld [vmem:[%s140 + $0x360] sm:$0xff]
      %v257 = vld [vmem:[%s140 + $0x368] sm:$0xff]
      %v258 = vld [vmem:[%s140 + $0x370] sm:$0xff]
      %v259 = vld [vmem:[%s140 + $0x378] sm:$0xff]
      %v260 = vld [vmem:[%s140 + $0x380] sm:$0xff]
      %v261 = vld [vmem:[%s140 + $0x388] sm:$0xff]
      %v262 = vld [vmem:[%s140 + $0x390] sm:$0xff]
      %v263 = vld [vmem:[%s140 + $0x398] sm:$0xff]
      %v264 = vld [vmem:[%s140 + $0x3a0] sm:$0xff]
      %v265 = vld [vmem:[%s140 + $0x3a8] sm:$0xff]
      %v266 = vld [vmem:[%s140 + $0x3b0] sm:$0xff]
      %v267 = vld [vmem:[%s140 + $0x3b8] sm:$0xff]
      %v268 = vld [vmem:[%s140 + $0x3c0] sm:$0xff]
      %v269 = vld [vmem:[%s140 + $0x3c8] sm:$0xff]
      %v270 = vld [vmem:[%s140 + $0x3d0] sm:$0xff]
      %v271 = vld [vmem:[%s140 + $0x3d8] sm:$0xff]
      %v272 = vld [vmem:[%s140 + $0x3e0] sm:$0xff]
      %v273 = vld [vmem:[%s140 + $0x3e8] sm:$0xff]
      %v274 = vld [vmem:[%s140 + $0x3f0] sm:$0xff]
      %v275 = vld [vmem:[%s140 + $0x3f8] sm:$0xff]
      %s276 = sld [smem:[#allocation2]]
      %v277 = vstv %s276
      %v278 = vmul.f32 %v148, %v277
      %v279 = vmul.f32 %v149, %v277
      %v280 = vmul.f32 %v150, %v277
      %v281 = vmul.f32 %v151, %v277
      %v282 = vmul.f32 %v152, %v277
      %v283 = vmul.f32 %v153, %v277
      %v284 = vmul.f32 %v154, %v277
      %v285 = vmul.f32 %v155, %v277
      %v286 = vmul.f32 %v156, %v277
      %v287 = vmul.f32 %v157, %v277
      %v288 = vmul.f32 %v158, %v277
      %v289 = vmul.f32 %v159, %v277
      %v290 = vmul.f32 %v160, %v277
      %v291 = vmul.f32 %v161, %v277
      %v292 = vmul.f32 %v162, %v277
      %v293 = vmul.f32 %v163, %v277
      %v294 = vmul.f32 %v164, %v277
      %v295 = vmul.f32 %v165, %v277
      %v296 = vmul.f32 %v166, %v277
      %v297 = vmul.f32 %v167, %v277
      %v298 = vmul.f32 %v168, %v277
      %v299 = vmul.f32 %v169, %v277
      %v300 = vmul.f32 %v170, %v277
      %v301 = vmul.f32 %v171, %v277
      %v302 = vmul.f32 %v172, %v277
      %v303 = vmul.f32 %v173, %v277
      %v304 = vmul.f32 %v174, %v277
      %v305 = vmul.f32 %v175, %v277
      %v306 = vmul.f32 %v176, %v277
      %v307 = vmul.f32 %v177, %v277
      %v308 = vmul.f32 %v178, %v277
      %v309 = vmul.f32 %v179, %v277
      %v310 = vmul.f32 %v180, %v277
      %v311 = vmul.f32 %v181, %v277
      %v312 = vmul.f32 %v182, %v277
      %v313 = vmul.f32 %v183, %v277
      %v314 = vmul.f32 %v184, %v277
      %v315 = vmul.f32 %v185, %v277
      %v316 = vmul.f32 %v186, %v277
      %v317 = vmul.f32 %v187, %v277
      %v318 = vmul.f32 %v188, %v277
      %v319 = vmul.f32 %v189, %v277
      %v320 = vmul.f32 %v190, %v277
      %v321 = vmul.f32 %v191, %v277
      %v322 = vmul.f32 %v192, %v277
      %v323 = vmul.f32 %v193, %v277
      %v324 = vmul.f32 %v194, %v277
      %v325 = vmul.f32 %v195, %v277
      %v326 = vmul.f32 %v196, %v277
      %v327 = vmul.f32 %v197, %v277
      %v328 = vmul.f32 %v198, %v277
      %v329 = vmul.f32 %v199, %v277
      %v330 = vmul.f32 %v200, %v277
      %v331 = vmul.f32 %v201, %v277
      %v332 = vmul.f32 %v202, %v277
      %v333 = vmul.f32 %v203, %v277
      %v334 = vmul.f32 %v204, %v277
      %v335 = vmul.f32 %v205, %v277
      %v336 = vmul.f32 %v206, %v277
      %v337 = vmul.f32 %v207, %v277
      %v338 = vmul.f32 %v208, %v277
      %v339 = vmul.f32 %v209, %v277
      %v340 = vmul.f32 %v210, %v277
      %v341 = vmul.f32 %v211, %v277
      %v342 = vmul.f32 %v212, %v277
      %v343 = vmul.f32 %v213, %v277
      %v344 = vmul.f32 %v214, %v277
      %v345 = vmul.f32 %v215, %v277
      %v346 = vmul.f32 %v216, %v277
      %v347 = vmul.f32 %v217, %v277
      %v348 = vmul.f32 %v218, %v277
      %v349 = vmul.f32 %v219, %v277
      %v350 = vmul.f32 %v220, %v277
      %v351 = vmul.f32 %v221, %v277
      %v352 = vmul.f32 %v222, %v277
      %v353 = vmul.f32 %v223, %v277
      %v354 = vmul.f32 %v224, %v277
      %v355 = vmul.f32 %v225, %v277
      %v356 = vmul.f32 %v226, %v277
      %v357 = vmul.f32 %v227, %v277
      %v358 = vmul.f32 %v228, %v277
      %v359 = vmul.f32 %v229, %v277
      %v360 = vmul.f32 %v230, %v277
      %v361 = vmul.f32 %v231, %v277
      %v362 = vmul.f32 %v232, %v277
      %v363 = vmul.f32 %v233, %v277
      %v364 = vmul.f32 %v234, %v277
      %v365 = vmul.f32 %v235, %v277
      %v366 = vmul.f32 %v236, %v277
      %v367 = vmul.f32 %v237, %v277
      %v368 = vmul.f32 %v238, %v277
      %v369 = vmul.f32 %v239, %v277
      %v370 = vmul.f32 %v240, %v277
      %v371 = vmul.f32 %v241, %v277
      %v372 = vmul.f32 %v242, %v277
      %v373 = vmul.f32 %v243, %v277
      %v374 = vmul.f32 %v244, %v277
      %v375 = vmul.f32 %v245, %v277
      %v376 = vmul.f32 %v246, %v277
      %v377 = vmul.f32 %v247, %v277
      %v378 = vmul.f32 %v248, %v277
      %v379 = vmul.f32 %v249, %v277
      %v380 = vmul.f32 %v250, %v277
      %v381 = vmul.f32 %v251, %v277
      %v382 = vmul.f32 %v252, %v277
      %v383 = vmul.f32 %v253, %v277
      %v384 = vmul.f32 %v254, %v277
      %v385 = vmul.f32 %v255, %v277
      %v386 = vmul.f32 %v256, %v277
      %v387 = vmul.f32 %v257, %v277
      %v388 = vmul.f32 %v258, %v277
      %v389 = vmul.f32 %v259, %v277
      %v390 = vmul.f32 %v260, %v277
      %v391 = vmul.f32 %v261, %v277
      %v392 = vmul.f32 %v262, %v277
      %v393 = vmul.f32 %v263, %v277
      %v394 = vmul.f32 %v264, %v277
      %v395 = vmul.f32 %v265, %v277
      %v396 = vmul.f32 %v266, %v277
      %v397 = vmul.f32 %v267, %v277
      %v398 = vmul.f32 %v268, %v277
      %v399 = vmul.f32 %v269, %v277
      %v400 = vmul.f32 %v270, %v277
      %v401 = vmul.f32 %v271, %v277
      %v402 = vmul.f32 %v272, %v277
      %v403 = vmul.f32 %v273, %v277
      %v404 = vmul.f32 %v274, %v277
      %v405 = vmul.f32 %v275, %v277
      %406 = vst [vmem:[%s146] sm:$0xff] %v278
      %407 = vst [vmem:[%s146 + $0x8] sm:$0xff] %v279
      %408 = vst [vmem:[%s146 + $0x10] sm:$0xff] %v280
      %409 = vst [vmem:[%s146 + $0x18] sm:$0xff] %v281
      %410 = vst [vmem:[%s146 + $0x20] sm:$0xff] %v282
      %411 = vst [vmem:[%s146 + $0x28] sm:$0xff] %v283
      %412 = vst [vmem:[%s146 + $0x30] sm:$0xff] %v284
      %413 = vst [vmem:[%s146 + $0x38] sm:$0xff] %v285
      %414 = vst [vmem:[%s146 + $0x40] sm:$0xff] %v286
      %415 = vst [vmem:[%s146 + $0x48] sm:$0xff] %v287
      %416 = vst [vmem:[%s146 + $0x50] sm:$0xff] %v288
      %417 = vst [vmem:[%s146 + $0x58] sm:$0xff] %v289
      %418 = vst [vmem:[%s146 + $0x60] sm:$0xff] %v290
      %419 = vst [vmem:[%s146 + $0x68] sm:$0xff] %v291
      %420 = vst [vmem:[%s146 + $0x70] sm:$0xff] %v292
      %421 = vst [vmem:[%s146 + $0x78] sm:$0xff] %v293
      %422 = vst [vmem:[%s146 + $0x80] sm:$0xff] %v294
      %423 = vst [vmem:[%s146 + $0x88] sm:$0xff] %v295
      %424 = vst [vmem:[%s146 + $0x90] sm:$0xff] %v296
      %425 = vst [vmem:[%s146 + $0x98] sm:$0xff] %v297
      %426 = vst [vmem:[%s146 + $0xa0] sm:$0xff] %v298
      %427 = vst [vmem:[%s146 + $0xa8] sm:$0xff] %v299
      %428 = vst [vmem:[%s146 + $0xb0] sm:$0xff] %v300
      %429 = vst [vmem:[%s146 + $0xb8] sm:$0xff] %v301
      %430 = vst [vmem:[%s146 + $0xc0] sm:$0xff] %v302
      %431 = vst [vmem:[%s146 + $0xc8] sm:$0xff] %v303
      %432 = vst [vmem:[%s146 + $0xd0] sm:$0xff] %v304
      %433 = vst [vmem:[%s146 + $0xd8] sm:$0xff] %v305
      %434 = vst [vmem:[%s146 + $0xe0] sm:$0xff] %v306
      %435 = vst [vmem:[%s146 + $0xe8] sm:$0xff] %v307
      %436 = vst [vmem:[%s146 + $0xf0] sm:$0xff] %v308
      %437 = vst [vmem:[%s146 + $0xf8] sm:$0xff] %v309
      %438 = vst [vmem:[%s146 + $0x100] sm:$0xff] %v310
      %439 = vst [vmem:[%s146 + $0x108] sm:$0xff] %v311
      %440 = vst [vmem:[%s146 + $0x110] sm:$0xff] %v312
      %441 = vst [vmem:[%s146 + $0x118] sm:$0xff] %v313
      %442 = vst [vmem:[%s146 + $0x120] sm:$0xff] %v314
      %443 = vst [vmem:[%s146 + $0x128] sm:$0xff] %v315
      %444 = vst [vmem:[%s146 + $0x130] sm:$0xff] %v316
      %445 = vst [vmem:[%s146 + $0x138] sm:$0xff] %v317
      %446 = vst [vmem:[%s146 + $0x140] sm:$0xff] %v318
      %447 = vst [vmem:[%s146 + $0x148] sm:$0xff] %v319
      %448 = vst [vmem:[%s146 + $0x150] sm:$0xff] %v320
      %449 = vst [vmem:[%s146 + $0x158] sm:$0xff] %v321
      %450 = vst [vmem:[%s146 + $0x160] sm:$0xff] %v322
      %451 = vst [vmem:[%s146 + $0x168] sm:$0xff] %v323
      %452 = vst [vmem:[%s146 + $0x170] sm:$0xff] %v324
      %453 = vst [vmem:[%s146 + $0x178] sm:$0xff] %v325
      %454 = vst [vmem:[%s146 + $0x180] sm:$0xff] %v326
      %455 = vst [vmem:[%s146 + $0x188] sm:$0xff] %v327
      %456 = vst [vmem:[%s146 + $0x190] sm:$0xff] %v328
      %457 = vst [vmem:[%s146 + $0x198] sm:$0xff] %v329
      %458 = vst [vmem:[%s146 + $0x1a0] sm:$0xff] %v330
      %459 = vst [vmem:[%s146 + $0x1a8] sm:$0xff] %v331
      %460 = vst [vmem:[%s146 + $0x1b0] sm:$0xff] %v332
      %461 = vst [vmem:[%s146 + $0x1b8] sm:$0xff] %v333
      %462 = vst [vmem:[%s146 + $0x1c0] sm:$0xff] %v334
      %463 = vst [vmem:[%s146 + $0x1c8] sm:$0xff] %v335
      %464 = vst [vmem:[%s146 + $0x1d0] sm:$0xff] %v336
      %465 = vst [vmem:[%s146 + $0x1d8] sm:$0xff] %v337
      %466 = vst [vmem:[%s146 + $0x1e0] sm:$0xff] %v338
      %467 = vst [vmem:[%s146 + $0x1e8] sm:$0xff] %v339
      %468 = vst [vmem:[%s146 + $0x1f0] sm:$0xff] %v340
      %469 = vst [vmem:[%s146 + $0x1f8] sm:$0xff] %v341
      %470 = vst [vmem:[%s146 + $0x200] sm:$0xff] %v342
      %471 = vst [vmem:[%s146 + $0x208] sm:$0xff] %v343
      %472 = vst [vmem:[%s146 + $0x210] sm:$0xff] %v344
      %473 = vst [vmem:[%s146 + $0x218] sm:$0xff] %v345
      %474 = vst [vmem:[%s146 + $0x220] sm:$0xff] %v346
      %475 = vst [vmem:[%s146 + $0x228] sm:$0xff] %v347
      %476 = vst [vmem:[%s146 + $0x230] sm:$0xff] %v348
      %477 = vst [vmem:[%s146 + $0x238] sm:$0xff] %v349
      %478 = vst [vmem:[%s146 + $0x240] sm:$0xff] %v350
      %479 = vst [vmem:[%s146 + $0x248] sm:$0xff] %v351
      %480 = vst [vmem:[%s146 + $0x250] sm:$0xff] %v352
      %481 = vst [vmem:[%s146 + $0x258] sm:$0xff] %v353
      %482 = vst [vmem:[%s146 + $0x260] sm:$0xff] %v354
      %483 = vst [vmem:[%s146 + $0x268] sm:$0xff] %v355
      %484 = vst [vmem:[%s146 + $0x270] sm:$0xff] %v356
      %485 = vst [vmem:[%s146 + $0x278] sm:$0xff] %v357
      %486 = vst [vmem:[%s146 + $0x280] sm:$0xff] %v358
      %487 = vst [vmem:[%s146 + $0x288] sm:$0xff] %v359
      %488 = vst [vmem:[%s146 + $0x290] sm:$0xff] %v360
      %489 = vst [vmem:[%s146 + $0x298] sm:$0xff] %v361
      %490 = vst [vmem:[%s146 + $0x2a0] sm:$0xff] %v362
      %491 = vst [vmem:[%s146 + $0x2a8] sm:$0xff] %v363
      %492 = vst [vmem:[%s146 + $0x2b0] sm:$0xff] %v364
      %493 = vst [vmem:[%s146 + $0x2b8] sm:$0xff] %v365
      %494 = vst [vmem:[%s146 + $0x2c0] sm:$0xff] %v366
      %495 = vst [vmem:[%s146 + $0x2c8] sm:$0xff] %v367
      %496 = vst [vmem:[%s146 + $0x2d0] sm:$0xff] %v368
      %497 = vst [vmem:[%s146 + $0x2d8] sm:$0xff] %v369
      %498 = vst [vmem:[%s146 + $0x2e0] sm:$0xff] %v370
      %499 = vst [vmem:[%s146 + $0x2e8] sm:$0xff] %v371
      %500 = vst [vmem:[%s146 + $0x2f0] sm:$0xff] %v372
      %501 = vst [vmem:[%s146 + $0x2f8] sm:$0xff] %v373
      %502 = vst [vmem:[%s146 + $0x300] sm:$0xff] %v374
      %503 = vst [vmem:[%s146 + $0x308] sm:$0xff] %v375
      %504 = vst [vmem:[%s146 + $0x310] sm:$0xff] %v376
      %505 = vst [vmem:[%s146 + $0x318] sm:$0xff] %v377
      %506 = vst [vmem:[%s146 + $0x320] sm:$0xff] %v378
      %507 = vst [vmem:[%s146 + $0x328] sm:$0xff] %v379
      %508 = vst [vmem:[%s146 + $0x330] sm:$0xff] %v380
      %509 = vst [vmem:[%s146 + $0x338] sm:$0xff] %v381
      %510 = vst [vmem:[%s146 + $0x340] sm:$0xff] %v382
      %511 = vst [vmem:[%s146 + $0x348] sm:$0xff] %v383
      %512 = vst [vmem:[%s146 + $0x350] sm:$0xff] %v384
      %513 = vst [vmem:[%s146 + $0x358] sm:$0xff] %v385
      %514 = vst [vmem:[%s146 + $0x360] sm:$0xff] %v386
      %515 = vst [vmem:[%s146 + $0x368] sm:$0xff] %v387
      %516 = vst [vmem:[%s146 + $0x370] sm:$0xff] %v388
      %517 = vst [vmem:[%s146 + $0x378] sm:$0xff] %v389
      %518 = vst [vmem:[%s146 + $0x380] sm:$0xff] %v390
      %519 = vst [vmem:[%s146 + $0x388] sm:$0xff] %v391
      %520 = vst [vmem:[%s146 + $0x390] sm:$0xff] %v392
      %521 = vst [vmem:[%s146 + $0x398] sm:$0xff] %v393
      %522 = vst [vmem:[%s146 + $0x3a0] sm:$0xff] %v394
      %523 = vst [vmem:[%s146 + $0x3a8] sm:$0xff] %v395
      %524 = vst [vmem:[%s146 + $0x3b0] sm:$0xff] %v396
      %525 = vst [vmem:[%s146 + $0x3b8] sm:$0xff] %v397
      %526 = vst [vmem:[%s146 + $0x3c0] sm:$0xff] %v398
      %527 = vst [vmem:[%s146 + $0x3c8] sm:$0xff] %v399
      %528 = vst [vmem:[%s146 + $0x3d0] sm:$0xff] %v400
      %529 = vst [vmem:[%s146 + $0x3d8] sm:$0xff] %v401
      %530 = vst [vmem:[%s146 + $0x3e0] sm:$0xff] %v402
      %531 = vst [vmem:[%s146 + $0x3e8] sm:$0xff] %v403
      %532 = vst [vmem:[%s146 + $0x3f0] sm:$0xff] %v404
      %533 = vst [vmem:[%s146 + $0x3f8] sm:$0xff] %v405
      %s534 = smul.u32 128, %s14
      %p535 = scmp.lt.s32.totalorder %s534, 255
      %s536 = scalar_select %p535, %s534, 255
      %s537 = smul.addr %s536, 8
      %s538 = scalar_lea.vmem %s2, %s537
      // Predicated region
      $region29: #{_normalize_step.3} parent=27 // pred_check
        %p539 = pneg %p79
      $region30: #{_normalize_step.3} parent=27 // pred_check_branch
        %541 = sbr.rel (%p539) target = $region32
      $region31: #{_normalize_step.3} parent=27 // pred_region
        %s542 = smul.u32 128, %s14
      $region32: #{_normalize_step.3} parent=27 // pred_fallthru
        _
    $region28: #{_normalize_step.3} parent=5 // pred_fallthru
      _
    %p543 = scmp.le.s32.totalorder 2, %s9
    // Predicated region
    $region33: #{_normalize_step.3} parent=5 // pred_check
      %p544 = pneg %p543
    $region34: #{_normalize_step.3} parent=5 // pred_check_branch
      %546 = sbr.rel (%p544) target = $region36
    $region35: #{_normalize_step.3} parent=5 // pred_region
      %s547 = ssub.s32 %s9, 2
      // Predicated region
      $region37: #{_normalize_step.3} parent=35 // pred_check
        %p548 = pneg %p85
      $region38: #{_normalize_step.3} parent=35 // pred_check_branch
        %550 = sbr.rel (%p548) target = $region40
      $region39: #{_normalize_step.3} parent=35 // pred_region
        %s551 = smul.u32 128, %s15
        %p552 = scmp.lt.s32.totalorder %s551, 255
        %s553 = scalar_select %p552, %s551, 255
        %s554 = smul.addr %s553, 8
        %s555 = scalar_lea.vmem %s2, %s554
      $region40: #{_normalize_step.3} parent=35 // pred_fallthru
        _
    $region36: #{_normalize_step.3} parent=5 // pred_fallthru
      _
  $region6: #{_normalize_step.3} parent=0 // loop_footer
    %s13 = sadd.s32 1, %s9
  $region7: #{_normalize_step.3} parent=0 // loop_footer_branch
    %8 = sbr.rel target = $region3
  $region8: #{_normalize_step.3} parent=0 // loop_exit
    _

</llo_original>
